<compile_context>
chip_gen: v6e
topology: v6e:2x2x1
jax: 0.10.0
libtpu: 0.0.40
codegen_flags: <defaults>
</compile_context>

<pallas_src>
import functools

import jax
import jax.numpy as jnp
from jax.experimental import pallas as pl
from jax.experimental.pallas import tpu as pltpu


def _inner_kernel(x_ref, w_ref, b_ref, feat_ref, pool_ref, *, inv_hw):
    # x_ref:    (1, C, THW)   one batch element, channels x spatial tile
    # w_ref:    (HID, C)      1x1-conv weight in transposed matrix form
    # b_ref:    (HID, 1)      bias (column vector)
    # feat_ref: (1, HID, THW) ReLU(conv) tile; lane dim = THW -> dense stores
    # pool_ref: (1, HID, 1)   pooled accumulator, resident across the HW axis
    hw_step = pl.program_id(1)

    x = x_ref[0]          # (C, THW)
    w = w_ref[...]        # (HID, C)
    b = b_ref[...]        # (HID, 1)

    # Transposed matmul on the MXU: (HID, C) x (C, THW) -> (HID, THW).
    # C/HID are tiny here so this is memory-bound glue; the matmul cost is
    # hidden under the HBM streams.
    h = jnp.dot(w, x, preferred_element_type=jnp.float32) + b
    h = jnp.maximum(h, 0.0)                    # ReLU
    feat_ref[0] = h

    # --- pooled accumulator across HW tiles ---
    @pl.when(hw_step == 0)
    def _():
        pool_ref[...] = jnp.zeros_like(pool_ref)

    pool_ref[0] += jnp.sum(h, axis=1, keepdims=True)   # (HID, 1) partial sum

    @pl.when(hw_step == pl.num_programs(1) - 1)
    def _():
        pool_ref[...] = pool_ref[...] * inv_hw          # finalize: mean


def _pick_spatial_tile(hw):
    """Largest lane-aligned (multiple of 128) tile that evenly divides HW."""
    for t in (2048, 1024, 512, 256, 128):
        if hw % t == 0:
            return t
    # Ragged HW: fall back to one full-extent block per batch element (legal:
    # block == full array dim), keeping the pooled mean exact.
    # TODO(synk): add lane masking if ragged-HW tiling is ever required.
    return hw


def inner_module_forward(x_nchw, w_t, b_col):
    """Synthetic inner module `m`: 1x1 conv + ReLU + global average pool.

    Returns [ {"features": NCHW array, "pooled": (B, HID) array} ]
    (list-of-dict structure, matching what ListDictToListModel expects).
    """
    B, C, H, W = x_nchw.shape
    HID = w_t.shape[0]
    HW = H * W

    # NCHW -> (B, C, HW): a *free* reshape (no transpose, no HBM re-stream).
    x_mat = x_nchw.reshape(B, C, HW)

    thw = _pick_spatial_tile(HW)
    n_hw = HW // thw

    # Explicit VMEM budget: double-buffered in/feature blocks + resident
    # params/pool + headroom.  Bounded well under v5e's 16 MiB scoped default
    # and v7x's 64 MiB physical VMEM for any tile chosen above.
    block_bytes = 4 * thw * (C + HID)
    resident_bytes = 4 * (HID * C + 2 * HID)
    vmem_limit = int(min(max(4 * block_bytes + resident_bytes + (1 << 20),
                             4 << 20), 32 << 20))

    kernel = functools.partial(_inner_kernel, inv_hw=1.0 / HW)

    feat_mat, pooled = pl.pallas_call(
        kernel,
        out_shape=(
            jax.ShapeDtypeStruct((B, HID, HW), jnp.float32),
            jax.ShapeDtypeStruct((B, HID, 1), jnp.float32),
        ),
        grid_spec=pltpu.PrefetchScalarGridSpec(
            num_scalar_prefetch=0,
            grid=(B, n_hw),
            in_specs=[
                pl.BlockSpec((1, C, thw), lambda b, s: (b, 0, s)),
                pl.BlockSpec((HID, C), lambda b, s: (0, 0)),
                pl.BlockSpec((HID, 1), lambda b, s: (0, 0)),
            ],
            out_specs=[
                pl.BlockSpec((1, HID, thw), lambda b, s: (b, 0, s)),
                # Same block across the HW-tile axis -> resident accumulator.
                pl.BlockSpec((1, HID, 1), lambda b, s: (b, 0, 0)),
            ],
        ),
        compiler_params=pltpu.CompilerParams(
            dimension_semantics=("parallel", "arbitrary"),
            vmem_limit_bytes=vmem_limit,
        ),
    )(x_mat, w_t, b_col)

    features = feat_mat.reshape(B, HID, H, W)   # free reshape back to NCHW
    pooled = pooled.reshape(B, HID)
    return [{"features": features, "pooled": pooled}]


def list_dict_to_list_model(x_nchw, w_t, b_col):
    """Equivalent of ListDictToListModel.forward: list(res[0].values())."""
    res = inner_module_forward(x_nchw, w_t, b_col)
    # TODO(synk): the list/dict unpacking is pure Python container glue; no
    # kernel equivalent exists (nor is one needed).
    return list(res[0].values())


if __name__ == "__main__":
    B, C, H, W = 2, 4, 16, 16
    HID = 32

    key = jax.random.PRNGKey(0)
    kx, kw, kb = jax.random.split(key, 3)

    x = jax.random.normal(kx, (B, C, H, W), dtype=jnp.float32)
    w_t = jax.random.normal(kw, (HID, C), dtype=jnp.float32) * 0.1   # (HID, C)
    b_col = jax.random.normal(kb, (HID, 1), dtype=jnp.float32) * 0.1  # (HID, 1)

    outs = list_dict_to_list_model(x, w_t, b_col)
    outs = [jax.block_until_ready(o) for o in outs]

    # Sanity checks against a plain-JAX reference.
    ref_feat = jnp.maximum(
        jnp.einsum("bchw,dc->bdhw", x, w_t) + b_col.reshape(1, HID, 1, 1), 0.0
    )
    ref_pool = jnp.mean(ref_feat, axis=(2, 3))
    assert outs[0].shape == (B, HID, H, W)
    assert outs[1].shape == (B, HID)
    assert jnp.allclose(outs[0], ref_feat, atol=1e-4, rtol=1e-4)
    assert jnp.allclose(outs[1], ref_pool, atol=1e-4, rtol=1e-4)

    print("KERNEL_OK")
</pallas_src>

<mosaic_0001>
module attributes {stable_mosaic.version = 11 : i64} {
  func.func @_inner_kernel(%arg0: i32, %arg1: i32, %arg2: memref<1x4x256xf32, #tpu.memory_space<vmem>>, %arg3: memref<32x4xf32, #tpu.memory_space<vmem>>, %arg4: memref<32x1xf32, #tpu.memory_space<vmem>>, %arg5: memref<1x32x256xf32, #tpu.memory_space<vmem>>, %arg6: memref<1x32x1xf32, #tpu.memory_space<vmem>>) attributes {dimension_semantics = [#tpu.dimension_semantics<parallel>, #tpu.dimension_semantics<arbitrary>], iteration_bounds = array<i64: 2, 1>, scalar_prefetch = 0 : i64, scratch_operands = 0 : i64, tpu.core_type = #tpu.core_type<tc>, window_params = [{transform_indices = @transform_0, window_bounds = array<i64: 1, 4, 256>}, {pipeline_mode = #tpu.pipeline_mode<synchronous>, transform_indices = @transform_1, window_bounds = array<i64: 32, 4>}, {pipeline_mode = #tpu.pipeline_mode<synchronous>, transform_indices = @transform_2, window_bounds = array<i64: 32, 1>}, {transform_indices = @transform_3, window_bounds = array<i64: 1, 32, 256>}, {transform_indices = @transform_4, window_bounds = array<i64: 1, 32, 1>}]} {
    %c0 = arith.constant 0 : index
    %c0_0 = arith.constant 0 : index
    %c0_1 = arith.constant 0 : index
    %0 = vector.load %arg2[%c0, %c0_0, %c0_1] : memref<1x4x256xf32, #tpu.memory_space<vmem>>, vector<1x4x256xf32>
    %1 = vector.shape_cast %0 : vector<1x4x256xf32> to vector<4x256xf32>
    %c0_2 = arith.constant 0 : index
    %c0_3 = arith.constant 0 : index
    %2 = vector.load %arg3[%c0_2, %c0_3] : memref<32x4xf32, #tpu.memory_space<vmem>>, vector<32x4xf32>
    %c0_4 = arith.constant 0 : index
    %c0_5 = arith.constant 0 : index
    %3 = vector.load %arg4[%c0_4, %c0_5] : memref<32x1xf32, #tpu.memory_space<vmem>>, vector<32x1xf32>
    %cst = arith.constant dense<0.000000e+00> : vector<32x256xf32>
    %4 = tpu.matmul %2, %1, %cst {dimension_numbers = #tpu.dot_dimension_numbers<[1], [0], [0], [1], [0, 0, 1, 1], [], []>} : vector<32x4xf32>, vector<4x256xf32>, vector<32x256xf32> -> vector<32x256xf32>
    %5 = vector.broadcast %3 : vector<32x1xf32> to vector<32x256xf32>
    %6 = arith.addf %4, %5 : vector<32x256xf32>
    %cst_6 = arith.constant 0.000000e+00 : f32
    %7 = vector.broadcast %cst_6 : f32 to vector<32x256xf32>
    %8 = arith.maximumf %6, %7 : vector<32x256xf32>
    %c0_7 = arith.constant 0 : index
    %c0_8 = arith.constant 0 : index
    %c0_9 = arith.constant 0 : index
    %9 = vector.load %arg5[%c0_7, %c0_8, %c0_9] : memref<1x32x256xf32, #tpu.memory_space<vmem>>, vector<1x32x256xf32>
    %10 = vector.shape_cast %9 : vector<1x32x256xf32> to vector<32x256xf32>
    %11 = vector.shape_cast %8 : vector<32x256xf32> to vector<1x32x256xf32>
    tpu.vector_store %arg5[%c0_7, %c0_8, %c0_9], %11 {strides = array<i32>} : memref<1x32x256xf32, #tpu.memory_space<vmem>>, vector<1x32x256xf32>,
    %c0_i32 = arith.constant 0 : i32
    %12 = arith.cmpi eq, %arg1, %c0_i32 : i32
    %13 = arith.extui %12 : i1 to i32
    %c0_i32_10 = arith.constant 0 : i32
    %14 = arith.cmpi ne, %13, %c0_i32_10 : i32
    scf.if %14 {
      %cst_20 = arith.constant 0.000000e+00 : f32
      %26 = vector.broadcast %cst_20 : f32 to vector<1x32x1xf32>
      %c0_21 = arith.constant 0 : index
      %c0_22 = arith.constant 0 : index
      %c0_23 = arith.constant 0 : index
      %27 = vector.load %arg6[%c0_21, %c0_22, %c0_23] : memref<1x32x1xf32, #tpu.memory_space<vmem>>, vector<1x32x1xf32>
      tpu.vector_store %arg6[%c0_21, %c0_22, %c0_23], %26 {strides = array<i32>} : memref<1x32x1xf32, #tpu.memory_space<vmem>>, vector<1x32x1xf32>,
    } else {
    }
    %c0_11 = arith.constant 0 : index
    %c0_12 = arith.constant 0 : index
    %c0_13 = arith.constant 0 : index
    %15 = vector.load %arg6[%c0_11, %c0_12, %c0_13] : memref<1x32x1xf32, #tpu.memory_space<vmem>>, vector<1x32x1xf32>
    %16 = vector.shape_cast %15 : vector<1x32x1xf32> to vector<32x1xf32>
    %cst_14 = arith.constant dense<0.000000e+00> : vector<32xf32>
    %17 = vector.multi_reduction <add>, %8, %cst_14 [1] : vector<32x256xf32> to vector<32xf32>
    %18 = vector.shape_cast %17 : vector<32xf32> to vector<32x1xf32>
    %19 = arith.addf %16, %18 : vector<32x1xf32>
    %c0_15 = arith.constant 0 : index
    %c0_16 = arith.constant 0 : index
    %c0_17 = arith.constant 0 : index
    %20 = vector.load %arg6[%c0_15, %c0_16, %c0_17] : memref<1x32x1xf32, #tpu.memory_space<vmem>>, vector<1x32x1xf32>
    %21 = vector.shape_cast %20 : vector<1x32x1xf32> to vector<32x1xf32>
    %22 = vector.shape_cast %19 : vector<32x1xf32> to vector<1x32x1xf32>
    tpu.vector_store %arg6[%c0_15, %c0_16, %c0_17], %22 {strides = array<i32>} : memref<1x32x1xf32, #tpu.memory_space<vmem>>, vector<1x32x1xf32>,
    %c0_i32_18 = arith.constant 0 : i32
    %23 = arith.cmpi eq, %arg1, %c0_i32_18 : i32
    %24 = arith.extui %23 : i1 to i32
    %c0_i32_19 = arith.constant 0 : i32
    %25 = arith.cmpi ne, %24, %c0_i32_19 : i32
    scf.if %25 {
      %c0_20 = arith.constant 0 : index
      %c0_21 = arith.constant 0 : index
      %c0_22 = arith.constant 0 : index
      %26 = vector.load %arg6[%c0_20, %c0_21, %c0_22] : memref<1x32x1xf32, #tpu.memory_space<vmem>>, vector<1x32x1xf32>
      %cst_23 = arith.constant 3.906250e-03 : f32
      %27 = vector.broadcast %cst_23 : f32 to vector<1x32x1xf32>
      %28 = arith.mulf %26, %27 : vector<1x32x1xf32>
      %c0_24 = arith.constant 0 : index
      %c0_25 = arith.constant 0 : index
      %c0_26 = arith.constant 0 : index
      %29 = vector.load %arg6[%c0_24, %c0_25, %c0_26] : memref<1x32x1xf32, #tpu.memory_space<vmem>>, vector<1x32x1xf32>
      tpu.vector_store %arg6[%c0_24, %c0_25, %c0_26], %28 {strides = array<i32>} : memref<1x32x1xf32, #tpu.memory_space<vmem>>, vector<1x32x1xf32>,
    } else {
    }
    return
  }
  func.func @transform_0(%arg0: i32, %arg1: i32) -> (i32, i32, i32) {
    %c0_i32 = arith.constant 0 : i32
    %c0_i32_0 = arith.constant 0 : i32
    return %arg0, %c0_i32, %arg1 : i32, i32, i32
  }
  func.func @transform_1(%arg0: i32, %arg1: i32) -> (i32, i32) {
    %c0_i32 = arith.constant 0 : i32
    %c0_i32_0 = arith.constant 0 : i32
    %c0_i32_1 = arith.constant 0 : i32
    return %c0_i32, %c0_i32_0 : i32, i32
  }
  func.func @transform_2(%arg0: i32, %arg1: i32) -> (i32, i32) {
    %c0_i32 = arith.constant 0 : i32
    %c0_i32_0 = arith.constant 0 : i32
    %c0_i32_1 = arith.constant 0 : i32
    return %c0_i32, %c0_i32_0 : i32, i32
  }
  func.func @transform_3(%arg0: i32, %arg1: i32) -> (i32, i32, i32) {
    %c0_i32 = arith.constant 0 : i32
    %c0_i32_0 = arith.constant 0 : i32
    return %arg0, %c0_i32, %arg1 : i32, i32, i32
  }
  func.func @transform_4(%arg0: i32, %arg1: i32) -> (i32, i32, i32) {
    %c0_i32 = arith.constant 0 : i32
    %c0_i32_0 = arith.constant 0 : i32
    %c0_i32_1 = arith.constant 0 : i32
    return %arg0, %c0_i32, %c0_i32_0 : i32, i32, i32
  }
}

</mosaic_0001>

<llo_original>
// kernel: tpu_custom_call.1
$region0: #{tpu_custom_call.1}
  #allocation0 [shape = 'u32[]', space=smem, size = 0x4, offset = 0x4, fixed_abs, tag = 'smem constant byte address 0x4 - core index']
  #allocation1 [shape = 'u32[144,128]{1,0:T(1,128)}', space=vmem, size = 0x12000, scoped, tag = 'internal scratch']
  %s0 = inlined_call_operand.vmem [shape: f32[2,4,256], index: 0, kind: input, shape index: {}]
  %s1 = inlined_call_operand.vmem [shape: f32[32,4], index: 1, kind: input, shape index: {}]
  %s2 = inlined_call_operand.vmem [shape: f32[32,1], index: 2, kind: input, shape index: {}]
  %s3 = inlined_call_operand.hbm [shape: f32[2,32,256], index: 3, kind: output, shape index: {0}]
  %s4 = inlined_call_operand.vmem [shape: f32[2,32,1], index: 4, kind: output, shape index: {1}]
  %5 = xla_tuple %s3, %s4
  %s6 = sld [smem:[#allocation0]]
  $region61: #{tpu_custom_call.1} parent=0
    _
  %s8 = ssub.s32 1, %s6
  %s9 = scalar_select 0, %s8, %s6
  $region1: #{tpu_custom_call.1} parent=0
    #allocation2 [shape = 'u8[65536]{0}', space=vmem, size = 0x10000, scoped, tag = 'output window, operand 0']
    #allocation3 [shape = 's32[2]{0}', space=sflag, size = 0x8, scoped, tag = 'scoped memory for tpu_custom_call.1']
    %10 = vsyncpa [#allocation3], 0
    %s11 = scalar_lea.sflag [#allocation3], 1
    %12 = vsyncpa %s11, 0
    loop: start=0, step=1, limit=4
    $region2: #{tpu_custom_call.1} parent=1 // loop_pre_header
      _
    $region3: #{tpu_custom_call.1} parent=1 // loop_header
      %s14 = sphi 0, %s18
      %p15 = scmp.ge.s32.totalorder %s14, 4
      %s21 = sphi 0, %s33
      %s22 = sphi 0, %s29
      %s23 = sphi 0, %s21
      %s24 = sphi 0, %s22
      %s25 = sphi 0, %s23
      %s26 = sphi 0, %s24
      %s38 = sphi 0, %s40
      %s41 = sphi 0, %s38
      %s42 = sphi 0, %s41
      %s58 = sphi 0, %s42
      %s62 = sphi 0, %s62
      %s64 = sphi 0, %s62
      %s65 = sphi 0, %s64
      %s79 = sphi 0, %s65
      %s83 = sphi 0, %s83
      %s85 = sphi 0, %s83
      %s86 = sphi 0, %s85
      %s100 = sphi 0, %s86
      %s108 = sphi 0, %s110
      %s111 = sphi 0, %s108
      %s112 = sphi 0, %s111
      %s128 = sphi 0, %s112
      %s134 = sphi 0, %s136
      %s137 = sphi 0, %s134
      %s138 = sphi 0, %s137
      %s154 = sphi 0, %s138
    $region4: #{tpu_custom_call.1} parent=1 // loop_header_branch
      %17 = sbr.rel (%p15) target = $region8
    $region5: #{tpu_custom_call.1} parent=1 // loop_body
      %s19 = ssub.s32 %s14, 1
      %s20 = ssub.s32 %s14, 2
      %s27 = sadd.s32 1, %s22
      %p28 = scmp.ge.s32.totalorder %s27, 1
      %s29 = scalar_select %p28, 0, %s27
      %s30 = sadd.s32 1, %s21
      %s31 = scalar_select %p28, %s30, %s21
      %p32 = scmp.ge.s32.totalorder %s31, 2
      %s33 = scalar_select %p32, 0, %s31
      %s34 = ssub.s32 %s21, %s33
      %s35 = ssub.s32 %s22, %s29
      %s36 = sor.u32 %s34, %s35
      %p37 = scmp.eq.s32.totalorder %s36, 0
      %s39 = sadd.s32 %s38, 1
      %s40 = scalar_select %p37, %s38, %s39
      %p43 = pneg %p37
      %p44 = scmp.eq.s32.totalorder %s14, 1
      %p45 = por %p43, %p44
      %p46 = scmp.ne.s32.totalorder %s38, %s41
      %p47 = scmp.eq.s32.totalorder %s14, 0
      %p48 = por %p46, %p47
      %p49 = scmp.ne.s32.totalorder %s38, %s41
      %p50 = scmp.eq.s32.totalorder %s19, 1
      %p51 = por %p49, %p50
      %p52 = scmp.ne.s32.totalorder %s41, %s42
      %p53 = scmp.eq.s32.totalorder %s19, 0
      %p54 = por %p52, %p53
      %p55 = scmp.ne.s32.totalorder %s41, %s42
      %p56 = scmp.eq.s32.totalorder %s20, 1
      %p57 = por %p55, %p56
      %p59 = scmp.ne.s32.totalorder %s42, %s58
      %p60 = scmp.eq.s32.totalorder %s20, 0
      %p61 = por %p59, %p60
      %s63 = sadd.s32 %s62, 1
      %p66 = scmp.eq.s32.totalorder %s14, 1
      %p67 = scmp.ne.s32.totalorder %s62, %s64
      %p68 = scmp.eq.s32.totalorder %s14, 0
      %p69 = por %p67, %p68
      %p70 = scmp.ne.s32.totalorder %s62, %s64
      %p71 = scmp.eq.s32.totalorder %s19, 1
      %p72 = por %p70, %p71
      %p73 = scmp.ne.s32.totalorder %s64, %s65
      %p74 = scmp.eq.s32.totalorder %s19, 0
      %p75 = por %p73, %p74
      %p76 = scmp.ne.s32.totalorder %s64, %s65
      %p77 = scmp.eq.s32.totalorder %s20, 1
      %p78 = por %p76, %p77
      %p80 = scmp.ne.s32.totalorder %s65, %s79
      %p81 = scmp.eq.s32.totalorder %s20, 0
      %p82 = por %p80, %p81
      %s84 = sadd.s32 %s83, 1
      %p87 = scmp.eq.s32.totalorder %s14, 1
      %p88 = scmp.ne.s32.totalorder %s83, %s85
      %p89 = scmp.eq.s32.totalorder %s14, 0
      %p90 = por %p88, %p89
      %p91 = scmp.ne.s32.totalorder %s83, %s85
      %p92 = scmp.eq.s32.totalorder %s19, 1
      %p93 = por %p91, %p92
      %p94 = scmp.ne.s32.totalorder %s85, %s86
      %p95 = scmp.eq.s32.totalorder %s19, 0
      %p96 = por %p94, %p95
      %p97 = scmp.ne.s32.totalorder %s85, %s86
      %p98 = scmp.eq.s32.totalorder %s20, 1
      %p99 = por %p97, %p98
      %p101 = scmp.ne.s32.totalorder %s86, %s100
      %p102 = scmp.eq.s32.totalorder %s20, 0
      %p103 = por %p101, %p102
      %s104 = ssub.s32 %s21, %s33
      %s105 = ssub.s32 %s22, %s29
      %s106 = sor.u32 %s104, %s105
      %p107 = scmp.eq.s32.totalorder %s106, 0
      %s109 = sadd.s32 %s108, 1
      %s110 = scalar_select %p107, %s108, %s109
      %p113 = pneg %p107
      %p114 = scmp.eq.s32.totalorder %s14, 1
      %p115 = por %p113, %p114
      %p116 = scmp.ne.s32.totalorder %s108, %s111
      %p117 = scmp.eq.s32.totalorder %s14, 0
      %p118 = por %p116, %p117
      %p119 = scmp.ne.s32.totalorder %s108, %s111
      %p120 = scmp.eq.s32.totalorder %s19, 1
      %p121 = por %p119, %p120
      %p122 = scmp.ne.s32.totalorder %s111, %s112
      %p123 = scmp.eq.s32.totalorder %s19, 0
      %p124 = por %p122, %p123
      %p125 = scmp.ne.s32.totalorder %s111, %s112
      %p126 = scmp.eq.s32.totalorder %s20, 1
      %p127 = por %p125, %p126
      %p129 = scmp.ne.s32.totalorder %s112, %s128
      %p130 = scmp.eq.s32.totalorder %s20, 0
      %p131 = por %p129, %p130
      %s132 = ssub.s32 %s21, %s33
      %p133 = scmp.eq.s32.totalorder %s132, 0
      %s135 = sadd.s32 %s134, 1
      %s136 = scalar_select %p133, %s134, %s135
      %p139 = pneg %p133
      %p140 = scmp.eq.s32.totalorder %s14, 1
      %p141 = por %p139, %p140
      %p142 = scmp.ne.s32.totalorder %s134, %s137
      %p143 = scmp.eq.s32.totalorder %s14, 0
      %p144 = por %p142, %p143
      %p145 = scmp.ne.s32.totalorder %s134, %s137
      %p146 = scmp.eq.s32.totalorder %s19, 1
      %p147 = por %p145, %p146
      %p148 = scmp.ne.s32.totalorder %s137, %s138
      %p149 = scmp.eq.s32.totalorder %s19, 0
      %p150 = por %p148, %p149
      %p151 = scmp.ne.s32.totalorder %s137, %s138
      %p152 = scmp.eq.s32.totalorder %s20, 1
      %p153 = por %p151, %p152
      %p155 = scmp.ne.s32.totalorder %s138, %s154
      %p156 = scmp.eq.s32.totalorder %s20, 0
      %p157 = por %p155, %p156
      %p158 = scmp.le.s32.totalorder 1, %s14
      %p159 = scmp.lt.s32.totalorder %s14, 3
      %p160 = pnand %p158, %p159
      %p161 = pneg %p160
      // Predicated region
      $region9: #{tpu_custom_call.1} parent=5 // pred_check
        _
      $region10: #{tpu_custom_call.1} parent=5 // pred_check_branch
        %163 = sbr.rel (%p160) target = $region12
      $region11: #{tpu_custom_call.1} parent=5 // pred_region
        %s164 = ssub.s32 %s14, 1
        // Predicated region
        $region13: #{tpu_custom_call.1} parent=11 // pred_check
          %p165 = pneg %p75
        $region14: #{tpu_custom_call.1} parent=11 // pred_check_branch
          %167 = sbr.rel (%p165) target = $region16
        $region15: #{tpu_custom_call.1} parent=11 // pred_region
          _
        $region16: #{tpu_custom_call.1} parent=11 // pred_fallthru
          _
        // Predicated region
        $region17: #{tpu_custom_call.1} parent=11 // pred_check
          %p168 = pneg %p96
        $region18: #{tpu_custom_call.1} parent=11 // pred_check_branch
          %170 = sbr.rel (%p168) target = $region20
        $region19: #{tpu_custom_call.1} parent=11 // pred_region
          _
        $region20: #{tpu_custom_call.1} parent=11 // pred_fallthru
          _
      $region12: #{tpu_custom_call.1} parent=5 // pred_fallthru
        _
      %p171 = scmp.lt.s32.totalorder %s14, 2
      // Predicated region
      $region21: #{tpu_custom_call.1} parent=5 // pred_check
        %p172 = pneg %p171
      $region22: #{tpu_custom_call.1} parent=5 // pred_check_branch
        %174 = sbr.rel (%p172) target = $region24
      $region23: #{tpu_custom_call.1} parent=5 // pred_region
        // Predicated region
        $region25: #{tpu_custom_call.1} parent=23 // pred_check
          %p175 = pneg %p48
        $region26: #{tpu_custom_call.1} parent=23 // pred_check_branch
          %177 = sbr.rel (%p175) target = $region28
        $region27: #{tpu_custom_call.1} parent=23 // pred_region
          %s178 = smul.u32 2, %s22
          %p179 = scmp.lt.s32.totalorder %s21, 1
          %s180 = scalar_select %p179, %s21, 1
          %p181 = scmp.lt.s32.totalorder %s178, 1
          %s182 = scalar_select %p181, %s178, 1
          %s183 = smul.addr %s180, 2
          %s184 = sadd.s32 %s182, %s183
          %s185 = smul.addr %s184, 4
          %s186 = scalar_lea.vmem %s0, %s185
          %s187 = smul.u32 2, %s22
        $region28: #{tpu_custom_call.1} parent=23 // pred_fallthru
          _
      $region24: #{tpu_custom_call.1} parent=5 // pred_fallthru
        _
      %p188 = scmp.le.s32.totalorder 1, %s14
      %p189 = scmp.lt.s32.totalorder %s14, 3
      %p190 = pnand %p188, %p189
      %p191 = pneg %p190
      // Predicated region
      $region29: #{tpu_custom_call.1} parent=5 // pred_check
        _
      $region30: #{tpu_custom_call.1} parent=5 // pred_check_branch
        %193 = sbr.rel (%p190) target = $region32
      $region31: #{tpu_custom_call.1} parent=5 // pred_region
        %s194 = ssub.s32 %s14, 1
        %s195 = smul.u32 2, %s24
        %p196 = scmp.lt.s32.totalorder %s23, 1
        %s197 = scalar_select %p196, %s23, 1
        %p198 = scmp.lt.s32.totalorder %s195, 1
        %s199 = scalar_select %p198, %s195, 1
        %s200 = smul.addr %s197, 2
        %s201 = sadd.s32 %s199, %s200
        %s202 = smul.addr %s201, 4
        %s203 = scalar_lea.vmem %s0, %s202
        %p204 = pneg %p54
        %p205 = pneg %p51
        %p206 = pneg %p75
        %p207 = pneg %p72
        %p208 = pneg %p96
        %p209 = pneg %p93
        %p210 = pneg %p124
        %p211 = pneg %p121
        %s212 = sand.u32 %s111, 1
        %s213 = scalar_lea.sflag [#allocation3], %s212
        %s214 = sand.u32 %s111, 1
        %s215 = smul.addr %s214, 64
        %s216 = scalar_lea.vmem [#allocation2], %s215
        %p217 = pneg %p150
        %p218 = pneg %p147
        %p219 = scmp.lt.s32.totalorder %s23, 1
        %s220 = scalar_select %p219, %s23, 1
        %s221 = smul.addr %s220, 4
        %s222 = smul.addr %s221, 8
        %s223 = scalar_lea.vmem %s4, %s222
        %s224 = smul.u32 2, %s24
        %p225 = scmp.lt.s32.totalorder %s23, 1
        %s226 = scalar_select %p225, %s23, 1
        %p227 = scmp.lt.s32.totalorder %s224, 1
        %s228 = scalar_select %p227, %s224, 1
        %s229 = smul.addr %s226, 2
        %s230 = sadd.s32 %s228, %s229
        %s231 = smul.addr %s230, 4
        %s232 = scalar_lea.vmem %s0, %s231
        %s233 = smul.u32 2, %s24
        %s234 = smul.u32 2, %s24
        %p235 = scmp.lt.s32.totalorder %s23, 1
        %s236 = scalar_select %p235, %s23, 1
        %s237 = smul.addr %s236, 4
        %s238 = smul.addr %s237, 8
        %s239 = scalar_lea.vmem %s4, %s238
        %v240 = vld [vmem:[%s232] sm:$0xff]
        %v241 = vld [vmem:[%s1] sm:$0xff]
        %v242 = vld [vmem:[%s1 + $0x8] sm:$0xff]
        %v243 = vld [vmem:[%s1 + $0x10] sm:$0xff]
        %v244 = vld [vmem:[%s1 + $0x18] sm:$0xff]
        %v245 = vld [vmem:[%s2] sm:$0xff]
        %v246 = vld [vmem:[%s2 + $0x8] sm:$0xff]
        %v247 = vld [vmem:[%s2 + $0x10] sm:$0xff]
        %v248 = vld [vmem:[%s2 + $0x18] sm:$0xff]
        %250 = vset.pattern.permute.xlu0 0
        %251 = vperm.xlu0 %250, %v245
        %v252 = vpop.permute.xlu0 %251
        %255 = vset.pattern.permute.xlu0 0
        %256 = vperm.xlu0 %255, %v246
        %v257 = vpop.permute.xlu0 %256
        %260 = vset.pattern.permute.xlu0 0
        %261 = vperm.xlu0 %260, %v247
        %v262 = vpop.permute.xlu0 %261
        %265 = vset.pattern.permute.xlu0 0
        %266 = vperm.xlu0 %265, %v248
        %v267 = vpop.permute.xlu0 %266
        %v270 = vcombine.high %v240, %v240
        %vm271 = vcmask 31744
        %v273 = vsel %vm271, %v241, 0
        %v276 = vsel %vm271, %v242, 0
        %v279 = vsel %vm271, %v243, 0
        %v282 = vsel %vm271, %v244, 0
        %vm284 = vcmask 1043456
        %v285 = vsel %vm284, %v240, 0
        %v287 = vsel %vm284, %v270, 0
        %289 = vmatprep.subr.mxu0 0.0
        %290 = vmatpush1.msra.mxu0 0.0
        %291 = vmatprep.subr.mxu0 0.0
        %292 = vmatpush1.msra.mxu0 0.0
        %293 = vmatprep.subr.mxu0 0.0
        %294 = vmatpush1.msra.mxu0 0.0
        %295 = vmatprep.subr.mxu0 0.0
        %296 = vmatpush1.msra.mxu0 0.0
        %297 = vmatprep.subr.mxu0 0.0
        %298 = vmatpush1.msra.mxu0 0.0
        %299 = vmatprep.subr.mxu0 0.0
        %300 = vmatpush1.msra.mxu0 0.0
        %301 = vmatprep.subr.mxu0 0.0
        %302 = vmatpush1.msra.mxu0 0.0
        %303 = vmatprep.subr.mxu0 0.0
        %304 = vmatpush1.msra.mxu0 0.0
        %305 = vmatprep.subr.mxu0 0.0
        %306 = vmatpush1.msra.mxu0 0.0
        %307 = vmatprep.subr.mxu0 0.0
        %308 = vmatpush1.msra.mxu0 0.0
        %309 = vmatprep.subr.mxu0 0.0
        %310 = vmatpush1.msra.mxu0 0.0
        %311 = vmatprep.subr.mxu0 0.0
        %312 = vmatpush1.msra.mxu0 0.0
        %313 = vmatprep.subr.mxu0 0.0
        %314 = vmatpush1.msra.mxu0 0.0
        %315 = vmatprep.subr.mxu0 0.0
        %316 = vmatpush1.msra.mxu0 0.0
        %317 = vmatprep.subr.mxu0 0.0
        %318 = vmatpush1.msra.mxu0 0.0
        %319 = vmatprep.subr.mxu0 %v287
        %320 = vmatpush1.msra.mxu0 %v285
        %321 = vmatprep.subr.mxu0 0.0
        %322 = vmatpush2.msra.mxu0 0.0
        %323 = vmatprep.subr.mxu0 0.0
        %324 = vmatpush2.msra.mxu0 0.0
        %325 = vmatprep.subr.mxu0 0.0
        %326 = vmatpush2.msra.mxu0 0.0
        %327 = vmatprep.subr.mxu0 0.0
        %328 = vmatpush2.msra.mxu0 0.0
        %329 = vmatprep.subr.mxu0 0.0
        %330 = vmatpush2.msra.mxu0 0.0
        %331 = vmatprep.subr.mxu0 0.0
        %332 = vmatpush2.msra.mxu0 0.0
        %333 = vmatprep.subr.mxu0 0.0
        %334 = vmatpush2.msra.mxu0 0.0
        %335 = vmatprep.subr.mxu0 0.0
        %336 = vmatpush2.msra.mxu0 0.0
        %337 = vmatprep.subr.mxu0 0.0
        %338 = vmatpush2.msra.mxu0 0.0
        %339 = vmatprep.subr.mxu0 0.0
        %340 = vmatpush2.msra.mxu0 0.0
        %341 = vmatprep.subr.mxu0 0.0
        %342 = vmatpush2.msra.mxu0 0.0
        %343 = vmatprep.subr.mxu0 0.0
        %344 = vmatpush2.msra.mxu0 0.0
        %345 = vmatprep.subr.mxu0 0.0
        %346 = vmatpush2.msra.mxu0 0.0
        %347 = vmatprep.subr.mxu0 0.0
        %348 = vmatpush2.msra.mxu0 0.0
        %349 = vmatprep.subr.mxu0 0.0
        %350 = vmatpush2.msra.mxu0 0.0
        %351 = vmatprep.subr.mxu0 0.0
        %352 = vmatpush2.msra.mxu0 0.0
        %353 = vmatprep.mubr.f32.mxu0 0.0
        %354 = vmatmul.mubr.f32.gmra.mxu0 %v273
        %v355 = vpop.f32.mrf.mxu0
        %v356 = vadd.f32 %v252, %v355
        %v357 = vpop.f32.mrf.mxu0
        %v358 = vadd.f32 %v252, %v357
        %359 = vmatprep.mubr.f32.mxu0 0.0
        %360 = vmatmul.mubr.f32.gmra.mxu0 %v276
        %v361 = vpop.f32.mrf.mxu0
        %v362 = vadd.f32 %v257, %v361
        %v363 = vpop.f32.mrf.mxu0
        %v364 = vadd.f32 %v257, %v363
        %365 = vmatprep.mubr.f32.mxu0 0.0
        %366 = vmatmul.mubr.f32.gmra.mxu0 %v279
        %v367 = vpop.f32.mrf.mxu0
        %v368 = vadd.f32 %v262, %v367
        %v369 = vpop.f32.mrf.mxu0
        %v370 = vadd.f32 %v262, %v369
        %371 = vmatprep.mubr.f32.mxu0 0.0
        %372 = vmatmul.mubr.f32.gmra.mxu0 %v282
        %v373 = vpop.f32.mrf.mxu0
        %v374 = vadd.f32 %v267, %v373
        %v375 = vpop.f32.mrf.mxu0
        %v376 = vadd.f32 %v267, %v375
        %377 = vdwg.mxu0
        %v378 = vmax.f32 %v356, 0.0
        %v379 = vmax.f32 %v358, 0.0
        %v380 = vmax.f32 %v362, 0.0
        %v381 = vmax.f32 %v364, 0.0
        %v382 = vmax.f32 %v368, 0.0
        %v383 = vmax.f32 %v370, 0.0
        %v384 = vmax.f32 %v374, 0.0
        %v385 = vmax.f32 %v376, 0.0
        %386 = vst [vmem:[%s216] sm:$0xff] %v378
        %387 = vst [vmem:[%s216 + $0x8] sm:$0xff] %v379
        %388 = vst [vmem:[%s216 + $0x10] sm:$0xff] %v380
        %389 = vst [vmem:[%s216 + $0x18] sm:$0xff] %v381
        %390 = vst [vmem:[%s216 + $0x20] sm:$0xff] %v382
        %391 = vst [vmem:[%s216 + $0x28] sm:$0xff] %v383
        %392 = vst [vmem:[%s216 + $0x30] sm:$0xff] %v384
        %393 = vst [vmem:[%s216 + $0x38] sm:$0xff] %v385
        %p394 = scmp.eq.s32.totalorder %s24, 0
        // Predicated region
        $region33: #{tpu_custom_call.1} parent=31 // pred_check
          %p395 = pneg %p394
        $region34: #{tpu_custom_call.1} parent=31 // pred_check_branch
          %397 = sbr.rel (%p395) target = $region36
        $region35: #{tpu_custom_call.1} parent=31 // pred_region
          %vm398 = vcmask 7168
          %399 = vst.msk [vmem:[%s239] sm:$0xff] %vm398, 0.0
          %400 = vst.msk [vmem:[%s239 + $0x8] sm:$0xff] %vm398, 0.0
          %401 = vst.msk [vmem:[%s239 + $0x10] sm:$0xff] %vm398, 0.0
          %402 = vst.msk [vmem:[%s239 + $0x18] sm:$0xff] %vm398, 0.0
        $region36: #{tpu_custom_call.1} parent=31 // pred_fallthru
          _
        %v403 = vld [vmem:[%s239] sm:$0xff]
        %v404 = vld [vmem:[%s239 + $0x8] sm:$0xff]
        %v405 = vld [vmem:[%s239 + $0x10] sm:$0xff]
        %v406 = vld [vmem:[%s239 + $0x18] sm:$0xff]
        %v407 = vadd.f32 %v378, %v379
        %408 = vadd.xlane.f32.xlu0 %v407
        %v409 = vpop.xlane.xlu0 %408
        %v410 = vadd.f32 %v380, %v381
        %411 = vadd.xlane.f32.xlu0 %v410
        %v412 = vpop.xlane.xlu0 %411
        %v413 = vadd.f32 %v382, %v383
        %414 = vadd.xlane.f32.xlu0 %v413
        %v415 = vpop.xlane.xlu0 %414
        %v416 = vadd.f32 %v384, %v385
        %417 = vadd.xlane.f32.xlu0 %v416
        %v418 = vpop.xlane.xlu0 %417
        %v419 = vadd.f32 %v403, %v409
        %v420 = vadd.f32 %v404, %v412
        %v421 = vadd.f32 %v405, %v415
        %v422 = vadd.f32 %v406, %v418
        %vm423 = vcmask 7168
        %424 = vst.msk [vmem:[%s239] sm:$0xff] %vm423, %v419
        %425 = vst.msk [vmem:[%s239 + $0x8] sm:$0xff] %vm423, %v420
        %426 = vst.msk [vmem:[%s239 + $0x10] sm:$0xff] %vm423, %v421
        %427 = vst.msk [vmem:[%s239 + $0x18] sm:$0xff] %vm423, %v422
        // Predicated region
        $region37: #{tpu_custom_call.1} parent=31 // pred_check
          %p428 = pneg %p394
        $region38: #{tpu_custom_call.1} parent=31 // pred_check_branch
          %430 = sbr.rel (%p428) target = $region40
        $region39: #{tpu_custom_call.1} parent=31 // pred_region
          %v431 = vld [vmem:[%s239] sm:$0xff]
          %v432 = vld [vmem:[%s239 + $0x8] sm:$0xff]
          %v433 = vld [vmem:[%s239 + $0x10] sm:$0xff]
          %v434 = vld [vmem:[%s239 + $0x18] sm:$0xff]
          %v435 = vmul.f32 %v431, 0.00390625
          %v436 = vmul.f32 %v432, 0.00390625
          %v437 = vmul.f32 %v433, 0.00390625
          %v438 = vmul.f32 %v434, 0.00390625
          %439 = vst.msk [vmem:[%s239] sm:$0xff] %vm423, %v435
          %440 = vst.msk [vmem:[%s239 + $0x8] sm:$0xff] %vm423, %v436
          %441 = vst.msk [vmem:[%s239 + $0x10] sm:$0xff] %vm423, %v437
          %442 = vst.msk [vmem:[%s239 + $0x18] sm:$0xff] %vm423, %v438
        $region40: #{tpu_custom_call.1} parent=31 // pred_fallthru
          _
        %s443 = sand.u32 %s111, 1
        %s444 = scalar_lea.sflag [#allocation3], %s443
        %s445 = sand.u32 %s111, 1
        %s446 = smul.addr %s445, 64
        %s447 = scalar_lea.vmem [#allocation2], %s446
        %p448 = scmp.lt.s32.totalorder %s23, 1
        %s449 = scalar_select %p448, %s23, 1
        %s450 = smul.addr %s449, 4
        %s451 = smul.addr %s450, 8
        %s452 = scalar_lea.vmem %s4, %s451
        // Predicated region
        $region41: #{tpu_custom_call.1} parent=31 // pred_check
          %p453 = pneg %p121
        $region42: #{tpu_custom_call.1} parent=31 // pred_check_branch
          %455 = sbr.rel (%p453) target = $region44
        $region43: #{tpu_custom_call.1} parent=31 // pred_region
          %s456 = smul.u32 2, %s24
          %s458 = ssub.s32 1024, 1024
          %459 = vsyncadd %s444, %s458
          %s460 = smul.addr %s23, 8
          %s461 = sadd.s32 %s456, %s460
          %s462 = smul.addr %s461, 128
          %s463 = scalar_lea.hbm %s3, %s462
          %s464 = sshll.u32 %s447, 4
          %s465 = int_to_ptr.vmem [resolvable:$true] %s464
          %470 = dma.vmem_to_hbm [thread:$0]  %s465, 1024, %s463, %s444, 256, 256, 16
        $region44: #{tpu_custom_call.1} parent=31 // pred_fallthru
          _
        // Predicated region
        $region45: #{tpu_custom_call.1} parent=31 // pred_check
          %p471 = pneg %p147
        $region46: #{tpu_custom_call.1} parent=31 // pred_check_branch
          %473 = sbr.rel (%p471) target = $region48
        $region47: #{tpu_custom_call.1} parent=31 // pred_region
          _
        $region48: #{tpu_custom_call.1} parent=31 // pred_fallthru
          _
      $region32: #{tpu_custom_call.1} parent=5 // pred_fallthru
        _
      %p474 = scmp.le.s32.totalorder 2, %s14
      // Predicated region
      $region49: #{tpu_custom_call.1} parent=5 // pred_check
        %p475 = pneg %p474
      $region50: #{tpu_custom_call.1} parent=5 // pred_check_branch
        %477 = sbr.rel (%p475) target = $region52
      $region51: #{tpu_custom_call.1} parent=5 // pred_region
        %s478 = ssub.s32 %s14, 2
        // Predicated region
        $region53: #{tpu_custom_call.1} parent=51 // pred_check
          %p479 = pneg %p127
        $region54: #{tpu_custom_call.1} parent=51 // pred_check_branch
          %481 = sbr.rel (%p479) target = $region56
        $region55: #{tpu_custom_call.1} parent=51 // pred_region
          %s482 = sand.u32 %s112, 1
          %s483 = scalar_lea.sflag [#allocation3], %s482
          %s484 = sand.u32 %s112, 1
          %s485 = smul.addr %s484, 64
          %s486 = scalar_lea.vmem [#allocation2], %s485
          %487 = dma.done %s483, 1024
        $region56: #{tpu_custom_call.1} parent=51 // pred_fallthru
          _
        // Predicated region
        $region57: #{tpu_custom_call.1} parent=51 // pred_check
          %p488 = pneg %p153
        $region58: #{tpu_custom_call.1} parent=51 // pred_check_branch
          %490 = sbr.rel (%p488) target = $region60
        $region59: #{tpu_custom_call.1} parent=51 // pred_region
          %p491 = scmp.lt.s32.totalorder %s25, 1
          %s492 = scalar_select %p491, %s25, 1
          %s493 = smul.addr %s492, 4
          %s494 = smul.addr %s493, 8
          %s495 = scalar_lea.vmem %s4, %s494
        $region60: #{tpu_custom_call.1} parent=51 // pred_fallthru
          _
      $region52: #{tpu_custom_call.1} parent=5 // pred_fallthru
        _
    $region6: #{tpu_custom_call.1} parent=1 // loop_footer
      %s18 = sadd.s32 1, %s14
    $region7: #{tpu_custom_call.1} parent=1 // loop_footer_branch
      %13 = sbr.rel target = $region3
    $region8: #{tpu_custom_call.1} parent=1 // loop_exit
      _
    %496 = vsyncpa [#allocation3], 1
    %s497 = scalar_lea.sflag [#allocation3], 1
    %498 = vsyncpa %s497, 1

</llo_original>
